<compile_context>
chip_gen: v6e
topology: v6e:2x2x1
jax: 0.10.0
libtpu: 0.0.40
codegen_flags: <defaults>
</compile_context>

<pallas_src>
import functools

import jax
import jax.numpy as jnp
from jax.experimental import pallas as pl
from jax.experimental.pallas import tpu as pltpu


# Module configuration (small, consistent with MultiDAE(p_dims)).
P_DIMS = [16, 64, 128]            # p_dims
Q_DIMS = P_DIMS[::-1]             # q_dims = p_dims[::-1]
DIMS = Q_DIMS + P_DIMS[1:]        # [128, 64, 16, 64, 128]
N_LAYERS = len(DIMS) - 1          # 4 Linear layers

# Max batch tile.  bf16 in/out double buffers at 8192 rows are ~8 MiB; f32
# intermediates add ~6-10 MiB -> comfortably inside a 32 MiB scoped-VMEM
# budget that is safe on v5e/v6e (128 MiB VMEM) and v7x (64 MiB per TC).
DEFAULT_MAX_TILE_B = 8192

_SUBLANE = 16   # bf16 packs 16 rows per sublane group; keep tiles aligned.


def _cdiv(a, b):
    return (a + b - 1) // b


def _round_up(n, m):
    return ((n + m - 1) // m) * m


def _choose_tile_b(batch, max_tile):
    """Pick a batch tile: multiple of 16, <= max_tile, targeting >=2 tiles
    (even tile count when possible) so v7x's two TensorCores stay busy."""
    max_tile = max(_SUBLANE, _round_up(max_tile, _SUBLANE))
    if batch <= _SUBLANE:
        return _SUBLANE
    n_tiles = max(2, _cdiv(batch, max_tile))
    if n_tiles % 2:
        n_tiles += 1
    tb = _round_up(_cdiv(batch, n_tiles), _SUBLANE)
    return min(tb, max_tile)


def _use_bf16_epilogue():
    """bf16 bias/tanh only on generations with a bf16 VPU/EUP (v6e, v7x)."""
    try:
        kind = jax.devices()[0].device_kind.lower()
    except Exception:
        return True
    for old in ("v2", "v3", "v4", "v5"):
        if old in kind:
            return False
    return True


def multidae_kernel(x_ref, *refs, bf16_epilogue):
    # refs = (w0, b0, w1, b1, ..., w{L-1}, b{L-1}, out_ref)
    out_ref = refs[-1]
    param_refs = refs[:-1]

    x_bf16 = x_ref[...]                       # (TILE_B, DIMS[0]) bf16
    x_f32 = x_bf16.astype(jnp.float32)

    # F.normalize(input): x / max(||x||, 1e-12) == x * rsqrt(max(||x||^2, 1e-24)).
    # Sum-of-squares accumulates in f32; the row scale `s` is applied AFTER
    # the layer-0 matmul to the narrower f32 accumulator ((s*x)@W0 == s*(x@W0)).
    sq = jnp.sum(x_f32 * x_f32, axis=1, keepdims=True)
    s = jax.lax.rsqrt(jnp.maximum(sq, 1e-24))  # (TILE_B, 1) f32, EUP rsqrt

    # Dropout: identity (eval/inference mode).

    h_bf16 = x_bf16
    out = None
    for i in range(N_LAYERS):
        w = param_refs[2 * i][...]             # (d_in, d_out) bf16
        b = param_refs[2 * i + 1][...]         # (1, d_out)   f32
        # bf16 x bf16 on the MXU with f32 accumulation.
        acc = jnp.dot(h_bf16, w, preferred_element_type=jnp.float32)
        if i == 0:
            acc = acc * s                      # deferred F.normalize scale
        if i != N_LAYERS - 1:
            if bf16_epilogue:
                # v6e/v7x: bias add + tanh in bf16 (bf16 VPU/EUP), halves
                # vreg footprint of the (TILE_B, 64/16) intermediates.
                h_bf16 = jnp.tanh(acc.astype(jnp.bfloat16)
                                  + b.astype(jnp.bfloat16))
            else:
                # v5e: keep elementwise in f32 (no bf16 VPU/EUP).
                h_bf16 = jnp.tanh(acc + b).astype(jnp.bfloat16)
        else:
            out = acc + b                      # final bias add in f32

    out_ref[...] = out.astype(out_ref.dtype)


def multidae_forward(x, params, *, max_tile_b=DEFAULT_MAX_TILE_B,
                     out_dtype=jnp.bfloat16):
    """x: (B, DIMS[0]).  params: list of (W:(d_in,d_out), b:(1,d_out))."""
    batch = x.shape[0]
    d_in0, d_out_last = DIMS[0], DIMS[-1]

    # bf16 activations at the HBM boundary (kernel consumes bf16 on the MXU
    # anyway); this roughly halves per-tile HBM traffic.
    x = x.astype(jnp.bfloat16)

    tb = _choose_tile_b(batch, max_tile_b)
    grid = (pl.cdiv(batch, tb),)

    # Weights in bf16 (MXU-native), biases in f32.
    flat_params = []
    param_specs = []
    for w, b in params:
        flat_params.append(w.astype(jnp.bfloat16))
        flat_params.append(b.astype(jnp.float32))
        # Constant index_map -> params stay resident in VMEM across all batch
        # tiles (total parameter footprint is ~40 KiB).
        param_specs.append(pl.BlockSpec(w.shape, lambda i: (0, 0)))
        param_specs.append(pl.BlockSpec(b.shape, lambda i: (0, 0)))

    in_specs = [pl.BlockSpec((tb, d_in0), lambda i: (i, 0))] + param_specs
    out_specs = pl.BlockSpec((tb, d_out_last), lambda i: (i, 0))

    flops = 2 * batch * sum(di * do for di, do in zip(DIMS[:-1], DIMS[1:]))
    transcendentals = batch * (sum(DIMS[1:-1]) + 1)   # tanh on hidden + rsqrt
    bytes_accessed = (batch * (d_in0 + d_out_last) * 2          # bf16 I/O
                      + sum(w.size * 2 + b.size * 4 for w, b in params))

    kernel = functools.partial(multidae_kernel,
                               bf16_epilogue=_use_bf16_epilogue())

    out = pl.pallas_call(
        kernel,
        out_shape=jax.ShapeDtypeStruct((batch, d_out_last), out_dtype),
        grid=grid,
        in_specs=in_specs,
        out_specs=out_specs,
        compiler_params=pltpu.CompilerParams(
            # Batch tiles are independent: shard across v7x's 2 TensorCores
            # (harmless no-op on single-TC v5e/v6e).
            dimension_semantics=("parallel",),
            # One generation-safe scoped-VMEM budget (v5e default is 16 MiB).
            vmem_limit_bytes=32 * 1024 * 1024,
        ),
        cost_estimate=pl.CostEstimate(
            flops=flops,
            transcendentals=transcendentals,
            bytes_accessed=bytes_accessed,
        ),
    )(x, *flat_params)
    return out


def init_params(key):
    """Deterministic init mirroring MultiDAE.init_weights():
       weight ~ N(0, sqrt(2/(fan_in+fan_out))), bias ~ N(0, 0.001)."""
    params = []
    for d_in, d_out in zip(DIMS[:-1], DIMS[1:]):
        key, kw, kb = jax.random.split(key, 3)
        std = jnp.sqrt(2.0 / (d_in + d_out)).astype(jnp.float32)
        # Stored as (d_in, d_out) == transpose of the PyTorch (out, in) weight.
        w = std * jax.random.normal(kw, (d_in, d_out), dtype=jnp.float32)
        b = 0.001 * jax.random.normal(kb, (1, d_out), dtype=jnp.float32)
        params.append((w, b))
    return params


def reference_forward(x, params):
    """Pure-JAX f32 reference for sanity checking."""
    norm = jnp.sqrt(jnp.sum(x * x, axis=1, keepdims=True))
    h = x / jnp.maximum(norm, 1e-12)
    for i, (w, b) in enumerate(params):
        h = h @ w + b
        if i != len(params) - 1:
            h = jnp.tanh(h)
    return h


if __name__ == "__main__":
    key = jax.random.PRNGKey(0)
    key, kx1, kx2 = jax.random.split(key, 3)
    params = init_params(key)

    # Test 1: tiny batch (single padded tile).
    batch = 4
    x = jax.random.normal(kx1, (batch, DIMS[0]), dtype=jnp.float32)
    out = jax.block_until_ready(multidae_forward(x, params))
    ref = reference_forward(x, params)
    assert out.shape == (batch, DIMS[-1])
    # bf16 boundary + bf16 MXU (f32 accumulation) -> loosened tolerance.
    assert jnp.allclose(out.astype(jnp.float32), ref, atol=2e-2, rtol=2e-2)

    # Test 2: multiple grid steps with a ragged last batch tile.
    batch2 = 40
    x2 = jax.random.normal(kx2, (batch2, DIMS[0]), dtype=jnp.float32)
    out2 = jax.block_until_ready(multidae_forward(x2, params, max_tile_b=16))
    ref2 = reference_forward(x2, params)
    assert out2.shape == (batch2, DIMS[-1])
    assert jnp.allclose(out2.astype(jnp.float32), ref2, atol=2e-2, rtol=2e-2)

    print("KERNEL_OK")
</pallas_src>

<mosaic_0001>
module attributes {stable_mosaic.version = 11 : i64} {
  func.func @multidae_kernel(%arg0: i32, %arg1: memref<16x128xbf16, #tpu.memory_space<vmem>>, %arg2: memref<128x64xbf16, #tpu.memory_space<vmem>>, %arg3: memref<1x64xf32, #tpu.memory_space<vmem>>, %arg4: memref<64x16xbf16, #tpu.memory_space<vmem>>, %arg5: memref<1x16xf32, #tpu.memory_space<vmem>>, %arg6: memref<16x64xbf16, #tpu.memory_space<vmem>>, %arg7: memref<1x64xf32, #tpu.memory_space<vmem>>, %arg8: memref<64x128xbf16, #tpu.memory_space<vmem>>, %arg9: memref<1x128xf32, #tpu.memory_space<vmem>>, %arg10: memref<16x128xbf16, #tpu.memory_space<vmem>>) attributes {dimension_semantics = [#tpu.dimension_semantics<parallel>], iteration_bounds = array<i64: 1>, scalar_prefetch = 0 : i64, scratch_operands = 0 : i64, tpu.core_type = #tpu.core_type<tc>, window_params = [{transform_indices = @transform_0, window_bounds = array<i64: 16, 128>}, {pipeline_mode = #tpu.pipeline_mode<synchronous>, transform_indices = @transform_1, window_bounds = array<i64: 128, 64>}, {pipeline_mode = #tpu.pipeline_mode<synchronous>, transform_indices = @transform_2, window_bounds = array<i64: 1, 64>}, {pipeline_mode = #tpu.pipeline_mode<synchronous>, transform_indices = @transform_3, window_bounds = array<i64: 64, 16>}, {pipeline_mode = #tpu.pipeline_mode<synchronous>, transform_indices = @transform_4, window_bounds = array<i64: 1, 16>}, {pipeline_mode = #tpu.pipeline_mode<synchronous>, transform_indices = @transform_5, window_bounds = array<i64: 16, 64>}, {pipeline_mode = #tpu.pipeline_mode<synchronous>, transform_indices = @transform_6, window_bounds = array<i64: 1, 64>}, {pipeline_mode = #tpu.pipeline_mode<synchronous>, transform_indices = @transform_7, window_bounds = array<i64: 64, 128>}, {pipeline_mode = #tpu.pipeline_mode<synchronous>, transform_indices = @transform_8, window_bounds = array<i64: 1, 128>}, {transform_indices = @transform_9, window_bounds = array<i64: 16, 128>}]} {
    %c0 = arith.constant 0 : index
    %c0_0 = arith.constant 0 : index
    %0 = vector.load %arg1[%c0, %c0_0] : memref<16x128xbf16, #tpu.memory_space<vmem>>, vector<16x128xbf16>
    %1 = arith.extf %0 : vector<16x128xbf16> to vector<16x128xf32>
    %2 = arith.mulf %1, %1 : vector<16x128xf32>
    %cst = arith.constant dense<0.000000e+00> : vector<16xf32>
    %3 = vector.multi_reduction <add>, %2, %cst [1] : vector<16x128xf32> to vector<16xf32>
    %4 = vector.shape_cast %3 : vector<16xf32> to vector<16x1xf32>
    %cst_1 = arith.constant 1.000000e-24 : f32
    %5 = vector.broadcast %cst_1 : f32 to vector<16x1xf32>
    %6 = arith.maximumf %4, %5 : vector<16x1xf32>
    %7 = math.rsqrt %6 : vector<16x1xf32>
    %c0_2 = arith.constant 0 : index
    %c0_3 = arith.constant 0 : index
    %8 = vector.load %arg2[%c0_2, %c0_3] : memref<128x64xbf16, #tpu.memory_space<vmem>>, vector<128x64xbf16>
    %c0_4 = arith.constant 0 : index
    %c0_5 = arith.constant 0 : index
    %9 = vector.load %arg3[%c0_4, %c0_5] : memref<1x64xf32, #tpu.memory_space<vmem>>, vector<1x64xf32>
    %cst_6 = arith.constant dense<0.000000e+00> : vector<16x64xf32>
    %10 = tpu.matmul %0, %8, %cst_6 {dimension_numbers = #tpu.dot_dimension_numbers<[1], [0], [0], [1], [0, 0, 1, 1], [], []>} : vector<16x128xbf16>, vector<128x64xbf16>, vector<16x64xf32> -> vector<16x64xf32>
    %11 = vector.broadcast %7 : vector<16x1xf32> to vector<16x64xf32>
    %12 = arith.mulf %10, %11 : vector<16x64xf32>
    %13 = arith.truncf %12 : vector<16x64xf32> to vector<16x64xbf16>
    %14 = arith.truncf %9 : vector<1x64xf32> to vector<1x64xbf16>
    %15 = vector.broadcast %14 : vector<1x64xbf16> to vector<16x64xbf16>
    %16 = arith.addf %13, %15 : vector<16x64xbf16>
    %17 = math.tanh %16 : vector<16x64xbf16>
    %c0_7 = arith.constant 0 : index
    %c0_8 = arith.constant 0 : index
    %18 = vector.load %arg4[%c0_7, %c0_8] : memref<64x16xbf16, #tpu.memory_space<vmem>>, vector<64x16xbf16>
    %c0_9 = arith.constant 0 : index
    %c0_10 = arith.constant 0 : index
    %19 = vector.load %arg5[%c0_9, %c0_10] : memref<1x16xf32, #tpu.memory_space<vmem>>, vector<1x16xf32>
    %cst_11 = arith.constant dense<0.000000e+00> : vector<16x16xf32>
    %20 = tpu.matmul %17, %18, %cst_11 {dimension_numbers = #tpu.dot_dimension_numbers<[1], [0], [0], [1], [0, 0, 1, 1], [], []>} : vector<16x64xbf16>, vector<64x16xbf16>, vector<16x16xf32> -> vector<16x16xf32>
    %21 = arith.truncf %20 : vector<16x16xf32> to vector<16x16xbf16>
    %22 = arith.truncf %19 : vector<1x16xf32> to vector<1x16xbf16>
    %23 = vector.broadcast %22 : vector<1x16xbf16> to vector<16x16xbf16>
    %24 = arith.addf %21, %23 : vector<16x16xbf16>
    %25 = math.tanh %24 : vector<16x16xbf16>
    %c0_12 = arith.constant 0 : index
    %c0_13 = arith.constant 0 : index
    %26 = vector.load %arg6[%c0_12, %c0_13] : memref<16x64xbf16, #tpu.memory_space<vmem>>, vector<16x64xbf16>
    %c0_14 = arith.constant 0 : index
    %c0_15 = arith.constant 0 : index
    %27 = vector.load %arg7[%c0_14, %c0_15] : memref<1x64xf32, #tpu.memory_space<vmem>>, vector<1x64xf32>
    %cst_16 = arith.constant dense<0.000000e+00> : vector<16x64xf32>
    %28 = tpu.matmul %25, %26, %cst_16 {dimension_numbers = #tpu.dot_dimension_numbers<[1], [0], [0], [1], [0, 0, 1, 1], [], []>} : vector<16x16xbf16>, vector<16x64xbf16>, vector<16x64xf32> -> vector<16x64xf32>
    %29 = arith.truncf %28 : vector<16x64xf32> to vector<16x64xbf16>
    %30 = arith.truncf %27 : vector<1x64xf32> to vector<1x64xbf16>
    %31 = vector.broadcast %30 : vector<1x64xbf16> to vector<16x64xbf16>
    %32 = arith.addf %29, %31 : vector<16x64xbf16>
    %33 = math.tanh %32 : vector<16x64xbf16>
    %c0_17 = arith.constant 0 : index
    %c0_18 = arith.constant 0 : index
    %34 = vector.load %arg8[%c0_17, %c0_18] : memref<64x128xbf16, #tpu.memory_space<vmem>>, vector<64x128xbf16>
    %c0_19 = arith.constant 0 : index
    %c0_20 = arith.constant 0 : index
    %35 = vector.load %arg9[%c0_19, %c0_20] : memref<1x128xf32, #tpu.memory_space<vmem>>, vector<1x128xf32>
    %cst_21 = arith.constant dense<0.000000e+00> : vector<16x128xf32>
    %36 = tpu.matmul %33, %34, %cst_21 {dimension_numbers = #tpu.dot_dimension_numbers<[1], [0], [0], [1], [0, 0, 1, 1], [], []>} : vector<16x64xbf16>, vector<64x128xbf16>, vector<16x128xf32> -> vector<16x128xf32>
    %37 = vector.broadcast %35 : vector<1x128xf32> to vector<16x128xf32>
    %38 = arith.addf %36, %37 : vector<16x128xf32>
    %39 = arith.truncf %38 : vector<16x128xf32> to vector<16x128xbf16>
    %c0_22 = arith.constant 0 : index
    %c0_23 = arith.constant 0 : index
    %40 = vector.load %arg10[%c0_22, %c0_23] : memref<16x128xbf16, #tpu.memory_space<vmem>>, vector<16x128xbf16>
    tpu.vector_store %arg10[%c0_22, %c0_23], %39 {strides = array<i32>} : memref<16x128xbf16, #tpu.memory_space<vmem>>, vector<16x128xbf16>,
    return
  }
  func.func @transform_0(%arg0: i32) -> (i32, i32) {
    %c0_i32 = arith.constant 0 : i32
    %c0_i32_0 = arith.constant 0 : i32
    return %arg0, %c0_i32 : i32, i32
  }
  func.func @transform_1(%arg0: i32) -> (i32, i32) {
    %c0_i32 = arith.constant 0 : i32
    %c0_i32_0 = arith.constant 0 : i32
    %c0_i32_1 = arith.constant 0 : i32
    return %c0_i32, %c0_i32_0 : i32, i32
  }
  func.func @transform_2(%arg0: i32) -> (i32, i32) {
    %c0_i32 = arith.constant 0 : i32
    %c0_i32_0 = arith.constant 0 : i32
    %c0_i32_1 = arith.constant 0 : i32
    return %c0_i32, %c0_i32_0 : i32, i32
  }
  func.func @transform_3(%arg0: i32) -> (i32, i32) {
    %c0_i32 = arith.constant 0 : i32
    %c0_i32_0 = arith.constant 0 : i32
    %c0_i32_1 = arith.constant 0 : i32
    return %c0_i32, %c0_i32_0 : i32, i32
  }
  func.func @transform_4(%arg0: i32) -> (i32, i32) {
    %c0_i32 = arith.constant 0 : i32
    %c0_i32_0 = arith.constant 0 : i32
    %c0_i32_1 = arith.constant 0 : i32
    return %c0_i32, %c0_i32_0 : i32, i32
  }
  func.func @transform_5(%arg0: i32) -> (i32, i32) {
    %c0_i32 = arith.constant 0 : i32
    %c0_i32_0 = arith.constant 0 : i32
    %c0_i32_1 = arith.constant 0 : i32
    return %c0_i32, %c0_i32_0 : i32, i32
  }
  func.func @transform_6(%arg0: i32) -> (i32, i32) {
    %c0_i32 = arith.constant 0 : i32
    %c0_i32_0 = arith.constant 0 : i32
    %c0_i32_1 = arith.constant 0 : i32
    return %c0_i32, %c0_i32_0 : i32, i32
  }
  func.func @transform_7(%arg0: i32) -> (i32, i32) {
    %c0_i32 = arith.constant 0 : i32
    %c0_i32_0 = arith.constant 0 : i32
    %c0_i32_1 = arith.constant 0 : i32
    return %c0_i32, %c0_i32_0 : i32, i32
  }
  func.func @transform_8(%arg0: i32) -> (i32, i32) {
    %c0_i32 = arith.constant 0 : i32
    %c0_i32_0 = arith.constant 0 : i32
    %c0_i32_1 = arith.constant 0 : i32
    return %c0_i32, %c0_i32_0 : i32, i32
  }
  func.func @transform_9(%arg0: i32) -> (i32, i32) {
    %c0_i32 = arith.constant 0 : i32
    %c0_i32_0 = arith.constant 0 : i32
    return %arg0, %c0_i32 : i32, i32
  }
}

</mosaic_0001>

<llo_original>
// kernel: tpu_custom_call.1
$region0: #{tpu_custom_call.1}
  #allocation0 [shape = 'u32[]', space=smem, size = 0x4, offset = 0x4, fixed_abs, tag = 'smem constant byte address 0x4 - core index']
  #allocation1 [shape = 'u32[144,128]{1,0:T(1,128)}', space=vmem, size = 0x12000, scoped, tag = 'internal scratch']
  %s0 = inlined_call_operand.vmem [shape: bf16[4,128], index: 0, kind: input, shape index: {}]
  %s1 = inlined_call_operand.vmem [shape: bf16[128,64], index: 1, kind: input, shape index: {}]
  %s2 = inlined_call_operand.vmem [shape: f32[1,64], index: 2, kind: input, shape index: {}]
  %s3 = inlined_call_operand.vmem [shape: bf16[64,16], index: 3, kind: input, shape index: {}]
  %s4 = inlined_call_operand.vmem [shape: f32[1,16], index: 4, kind: input, shape index: {}]
  %s5 = inlined_call_operand.vmem [shape: bf16[16,64], index: 5, kind: input, shape index: {}]
  %s6 = inlined_call_operand.vmem [shape: f32[1,64], index: 6, kind: input, shape index: {}]
  %s7 = inlined_call_operand.vmem [shape: bf16[64,128], index: 7, kind: input, shape index: {}]
  %s8 = inlined_call_operand.vmem [shape: f32[1,128], index: 8, kind: input, shape index: {}]
  %s9 = inlined_call_operand.hbm [shape: bf16[4,128], index: 9, kind: output, shape index: {}]
  %s10 = sld [smem:[#allocation0]]
  $region46: #{tpu_custom_call.1} parent=0
    _
  %s12 = ssub.s32 1, %s10
  %s13 = scalar_select 0, %s12, %s10
  $region1: #{tpu_custom_call.1} parent=0
    #allocation2 [shape = 'u8[4096]{0}', space=vmem, size = 0x1000, scoped, tag = 'output window, operand 0, single buffered']
    #allocation3 [shape = 's32[1]{0}', space=sflag, size = 0x4, scoped, tag = 'scoped memory for tpu_custom_call.1']
    %14 = vsyncpa [#allocation3], 0
    // Predicated region
    $region2: #{tpu_custom_call.1} parent=1 // pred_check
      _
    $region3: #{tpu_custom_call.1} parent=1 // pred_check_branch
      %16 = sbr.rel (0) target = $region5
    $region4: #{tpu_custom_call.1} parent=1 // pred_region
      _
    $region5: #{tpu_custom_call.1} parent=1 // pred_fallthru
      _
    // Predicated region
    $region6: #{tpu_custom_call.1} parent=1 // pred_check
      _
    $region7: #{tpu_custom_call.1} parent=1 // pred_check_branch
      %18 = sbr.rel (0) target = $region9
    $region8: #{tpu_custom_call.1} parent=1 // pred_region
      _
    $region9: #{tpu_custom_call.1} parent=1 // pred_fallthru
      _
    // Predicated region
    $region10: #{tpu_custom_call.1} parent=1 // pred_check
      _
    $region11: #{tpu_custom_call.1} parent=1 // pred_check_branch
      %20 = sbr.rel (0) target = $region13
    $region12: #{tpu_custom_call.1} parent=1 // pred_region
      _
    $region13: #{tpu_custom_call.1} parent=1 // pred_fallthru
      _
    // Predicated region
    $region14: #{tpu_custom_call.1} parent=1 // pred_check
      _
    $region15: #{tpu_custom_call.1} parent=1 // pred_check_branch
      %22 = sbr.rel (0) target = $region17
    $region16: #{tpu_custom_call.1} parent=1 // pred_region
      _
    $region17: #{tpu_custom_call.1} parent=1 // pred_fallthru
      _
    // Predicated region
    $region18: #{tpu_custom_call.1} parent=1 // pred_check
      _
    $region19: #{tpu_custom_call.1} parent=1 // pred_check_branch
      %24 = sbr.rel (0) target = $region21
    $region20: #{tpu_custom_call.1} parent=1 // pred_region
      _
    $region21: #{tpu_custom_call.1} parent=1 // pred_fallthru
      _
    // Predicated region
    $region22: #{tpu_custom_call.1} parent=1 // pred_check
      _
    $region23: #{tpu_custom_call.1} parent=1 // pred_check_branch
      %26 = sbr.rel (0) target = $region25
    $region24: #{tpu_custom_call.1} parent=1 // pred_region
      _
    $region25: #{tpu_custom_call.1} parent=1 // pred_fallthru
      _
    // Predicated region
    $region26: #{tpu_custom_call.1} parent=1 // pred_check
      _
    $region27: #{tpu_custom_call.1} parent=1 // pred_check_branch
      %28 = sbr.rel (0) target = $region29
    $region28: #{tpu_custom_call.1} parent=1 // pred_region
      _
    $region29: #{tpu_custom_call.1} parent=1 // pred_fallthru
      _
    // Predicated region
    $region30: #{tpu_custom_call.1} parent=1 // pred_check
      _
    $region31: #{tpu_custom_call.1} parent=1 // pred_check_branch
      %30 = sbr.rel (0) target = $region33
    $region32: #{tpu_custom_call.1} parent=1 // pred_region
      _
    $region33: #{tpu_custom_call.1} parent=1 // pred_fallthru
      _
    // Predicated region
    $region34: #{tpu_custom_call.1} parent=1 // pred_check
      _
    $region35: #{tpu_custom_call.1} parent=1 // pred_check_branch
      %32 = sbr.rel (0) target = $region37
    $region36: #{tpu_custom_call.1} parent=1 // pred_region
      _
    $region37: #{tpu_custom_call.1} parent=1 // pred_fallthru
      _
    %v34 = vld [vmem:[%s0] sm:$0x3]
    %v35 = vld [vmem:[%s0 + $0x2] sm:$0x3]
    %v36 = vld [vmem:[%s0 + $0x4] sm:$0x3]
    %v37 = vld [vmem:[%s0 + $0x6] sm:$0x3]
    %v38 = vunpack.c.l.bf16 %v34
    %v39 = vunpack.c.l.bf16 %v35
    %v40 = vunpack.c.l.bf16 %v36
    %v41 = vunpack.c.l.bf16 %v37
    %v42 = vmul.f32 %v38, %v38
    %v43 = vmul.f32 %v39, %v39
    %v44 = vmul.f32 %v40, %v40
    %v45 = vmul.f32 %v41, %v41
    %v50 = vcombine.low %v42, %v43
    %v51 = vcombine.low %v44, %v45
    %54 = vadd.xlane.f32.xlu0 %v50
    %v55 = vpop.xlane.xlu0 %54
    %56 = vadd.xlane.f32.xlu0 %v51
    %v57 = vpop.xlane.xlu0 %56
    %v58 = vmax.f32 %v55, 1e-24
    %v59 = vmax.f32 %v57, 1e-24
    %v60 = vrsqrt.pop %v58
    %v61 = vrsqrt.pop %v59
    %v62 = vld [vmem:[%s1] sm:$0xf]
    %v63 = vld [vmem:[%s1 + $0x4] sm:$0xf]
    %v64 = vld [vmem:[%s1 + $0x8] sm:$0xf]
    %v65 = vld [vmem:[%s1 + $0xc] sm:$0xf]
    %v66 = vld [vmem:[%s1 + $0x10] sm:$0xf]
    %v67 = vld [vmem:[%s1 + $0x14] sm:$0xf]
    %v68 = vld [vmem:[%s1 + $0x18] sm:$0xf]
    %v69 = vld [vmem:[%s1 + $0x1c] sm:$0xf]
    %v70 = vld [vmem:[%s1 + $0x20] sm:$0xf]
    %v71 = vld [vmem:[%s1 + $0x24] sm:$0xf]
    %v72 = vld [vmem:[%s1 + $0x28] sm:$0xf]
    %v73 = vld [vmem:[%s1 + $0x2c] sm:$0xf]
    %v74 = vld [vmem:[%s1 + $0x30] sm:$0xf]
    %v75 = vld [vmem:[%s1 + $0x34] sm:$0xf]
    %v76 = vld [vmem:[%s1 + $0x38] sm:$0xf]
    %v77 = vld [vmem:[%s1 + $0x3c] sm:$0xf]
    %v78 = vld [vmem:[%s2] sm:$0x1]
    %v83 = vcombine.low %v34, %v35
    %v84 = vcombine.low %v36, %v37
    %v86 = vunpack.c.l.s4 1983009808
    %v87 = vunpack.c.0.s8 %v86
    %v88 = vlaneseq
    %v89 = vshrl.u32 %v88, 7
    %v90 = vsub.s32 %v87, %v89
    %v91 = vrot.slane %v83, %v90
    %v93 = vunpack.c.l.s4 1983009808
    %v94 = vunpack.c.0.s8 %v93
    %v95 = vlaneseq
    %v96 = vshrl.u32 %v95, 7
    %v97 = vsub.s32 %v94, %v96
    %v98 = vrot.slane %v84, %v97
    %v99 = vcombine.low %v91, %v98
    %v117 = vunpack.c.l.b16 %v62
    %v118 = vunpack.c.l.b16 %v63
    %v119 = vunpack.c.l.b16 %v64
    %v120 = vunpack.c.l.b16 %v65
    %v121 = vunpack.c.l.b16 %v66
    %v122 = vunpack.c.l.b16 %v67
    %v123 = vunpack.c.l.b16 %v68
    %v124 = vunpack.c.l.b16 %v69
    %v125 = vunpack.c.l.b16 %v70
    %v126 = vunpack.c.l.b16 %v71
    %v127 = vunpack.c.l.b16 %v72
    %v128 = vunpack.c.l.b16 %v73
    %v129 = vunpack.c.l.b16 %v74
    %v130 = vunpack.c.l.b16 %v75
    %v131 = vunpack.c.l.b16 %v76
    %v132 = vunpack.c.l.b16 %v77
    %v133 = vpack.c.b16 %v118, %v117
    %v134 = vpack.c.b16 %v120, %v119
    %v135 = vpack.c.b16 %v122, %v121
    %v136 = vpack.c.b16 %v124, %v123
    %v137 = vpack.c.b16 %v126, %v125
    %v138 = vpack.c.b16 %v128, %v127
    %v139 = vpack.c.b16 %v130, %v129
    %v140 = vpack.c.b16 %v132, %v131
    %149 = vmatprep.subr.bf16.mxu0 0
    %150 = vmatpush1.bf16.msra.mxu0 %v140
    %151 = vmatprep.subr.bf16.mxu0 0
    %152 = vmatpush1.bf16.msra.mxu0 %v139
    %153 = vmatprep.subr.bf16.mxu0 0
    %154 = vmatpush1.bf16.msra.mxu0 %v138
    %155 = vmatprep.subr.bf16.mxu0 0
    %156 = vmatpush1.bf16.msra.mxu0 %v137
    %157 = vmatprep.subr.bf16.mxu0 0
    %158 = vmatpush1.bf16.msra.mxu0 %v136
    %159 = vmatprep.subr.bf16.mxu0 0
    %160 = vmatpush1.bf16.msra.mxu0 %v135
    %161 = vmatprep.subr.bf16.mxu0 0
    %162 = vmatpush1.bf16.msra.mxu0 %v134
    %163 = vmatprep.subr.bf16.mxu0 0
    %164 = vmatpush1.bf16.msra.mxu0 %v133
    %165 = vmatprep.subr.bf16.mxu0 0
    %166 = vmatpush2.bf16.msra.mxu0 0
    %167 = vmatprep.subr.bf16.mxu0 0
    %168 = vmatpush2.bf16.msra.mxu0 0
    %169 = vmatprep.subr.bf16.mxu0 0
    %170 = vmatpush2.bf16.msra.mxu0 0
    %171 = vmatprep.subr.bf16.mxu0 0
    %172 = vmatpush2.bf16.msra.mxu0 0
    %173 = vmatprep.subr.bf16.mxu0 0
    %174 = vmatpush2.bf16.msra.mxu0 0
    %175 = vmatprep.subr.bf16.mxu0 0
    %176 = vmatpush2.bf16.msra.mxu0 0
    %177 = vmatprep.subr.bf16.mxu0 0
    %178 = vmatpush2.bf16.msra.mxu0 0
    %179 = vmatprep.subr.bf16.mxu0 0
    %180 = vmatpush2.bf16.msra.mxu0 0
    %181 = vmatprep.mubr.bf16.mxu0 0
    %182 = vmatmul.mubr.bf16.gmra.mxu0 %v99
    %v183 = vpop.f32.mrf.mxu0
    %v184 = vadd.f32 0.0, %v183
    %v185 = vpop.f32.mrf.mxu0
    %v186 = vpop.f32.mrf.mxu0
    %v187 = vadd.f32 0.0, %v186
    %v188 = vpop.f32.mrf.mxu0
    %189 = vdwg.mxu0
    %v190 = vmul.f32 %v184, %v60
    %v191 = vmul.f32 %v187, %v61
    %v192 = vpack.c.bf16 %v191, %v190
    %v193 = vpack.c.bf16 %v78, %v78
    %v195 = vpack.i.b16 %v193, %v193
    %v197 = vlaneseq
    %v198 = vshrl.u32 %v197, 7
    %v199 = vsub.s32 0, %v198
    %v200 = vrot.slane %v195, %v199
    %v201 = vadd.bf16 %v192, %v200
    %v202 = vtanh.bf16.pop %v201
    %v203 = vld [vmem:[%s3] sm:$0xf]
    %v204 = vld [vmem:[%s3 + $0x4] sm:$0xf]
    %v205 = vld [vmem:[%s3 + $0x8] sm:$0xf]
    %v206 = vld [vmem:[%s3 + $0xc] sm:$0xf]
    %v207 = vld [vmem:[%s3 + $0x10] sm:$0xf]
    %v208 = vld [vmem:[%s3 + $0x14] sm:$0xf]
    %v209 = vld [vmem:[%s3 + $0x18] sm:$0xf]
    %v210 = vld [vmem:[%s3 + $0x1c] sm:$0xf]
    %v211 = vld [vmem:[%s4] sm:$0x1]
    %v220 = vunpack.c.l.b16 %v203
    %v221 = vunpack.c.l.b16 %v204
    %v222 = vunpack.c.l.b16 %v205
    %v223 = vunpack.c.l.b16 %v206
    %v224 = vunpack.c.l.b16 %v207
    %v225 = vunpack.c.l.b16 %v208
    %v226 = vunpack.c.l.b16 %v209
    %v227 = vunpack.c.l.b16 %v210
    %v228 = vpack.c.b16 %v221, %v220
    %v229 = vpack.c.b16 %v223, %v222
    %v230 = vpack.c.b16 %v225, %v224
    %v231 = vpack.c.b16 %v227, %v226
    %vm236 = vcmask 523264
    %v238 = vsel %vm236, %v202, 0
    %240 = vmatprep.subr.bf16.mxu0 0
    %241 = vmatpush1.bf16.msra.mxu0 0
    %242 = vmatprep.subr.bf16.mxu0 0
    %243 = vmatpush1.bf16.msra.mxu0 0
    %244 = vmatprep.subr.bf16.mxu0 0
    %245 = vmatpush1.bf16.msra.mxu0 0
    %246 = vmatprep.subr.bf16.mxu0 0
    %247 = vmatpush1.bf16.msra.mxu0 0
    %248 = vmatprep.subr.bf16.mxu0 0
    %249 = vmatpush1.bf16.msra.mxu0 %v231
    %250 = vmatprep.subr.bf16.mxu0 0
    %251 = vmatpush1.bf16.msra.mxu0 %v230
    %252 = vmatprep.subr.bf16.mxu0 0
    %253 = vmatpush1.bf16.msra.mxu0 %v229
    %254 = vmatprep.subr.bf16.mxu0 0
    %255 = vmatpush1.bf16.msra.mxu0 %v228
    %256 = vmatprep.subr.bf16.mxu0 0
    %257 = vmatpush2.bf16.msra.mxu0 0
    %258 = vmatprep.subr.bf16.mxu0 0
    %259 = vmatpush2.bf16.msra.mxu0 0
    %260 = vmatprep.subr.bf16.mxu0 0
    %261 = vmatpush2.bf16.msra.mxu0 0
    %262 = vmatprep.subr.bf16.mxu0 0
    %263 = vmatpush2.bf16.msra.mxu0 0
    %264 = vmatprep.subr.bf16.mxu0 0
    %265 = vmatpush2.bf16.msra.mxu0 0
    %266 = vmatprep.subr.bf16.mxu0 0
    %267 = vmatpush2.bf16.msra.mxu0 0
    %268 = vmatprep.subr.bf16.mxu0 0
    %269 = vmatpush2.bf16.msra.mxu0 0
    %270 = vmatprep.subr.bf16.mxu0 0
    %271 = vmatpush2.bf16.msra.mxu0 0
    %272 = vmatprep.mubr.bf16.mxu0 0
    %273 = vmatmul.mubr.bf16.gmra.mxu0 %v238
    %v274 = vpop.f32.mrf.mxu0
    %v275 = vadd.f32 0.0, %v274
    %v276 = vpop.f32.mrf.mxu0
    %v277 = vpop.f32.mrf.mxu0
    %v278 = vadd.f32 0.0, %v277
    %v279 = vpop.f32.mrf.mxu0
    %280 = vdwg.mxu0
    %v281 = vpack.c.bf16 %v278, %v275
    %v282 = vpack.c.bf16 %v211, %v211
    %v284 = vpack.i.b16 %v282, %v282
    %v286 = vlaneseq
    %v287 = vshrl.u32 %v286, 7
    %v288 = vsub.s32 0, %v287
    %v289 = vrot.slane %v284, %v288
    %v290 = vadd.bf16 %v281, %v289
    %v291 = vtanh.bf16.pop %v290
    %v292 = vld [vmem:[%s5] sm:$0xf]
    %v293 = vld [vmem:[%s5 + $0x4] sm:$0xf]
    %v294 = vld [vmem:[%s6] sm:$0x1]
    %v297 = vunpack.c.l.b16 %v292
    %v298 = vunpack.c.l.b16 %v293
    %v299 = vpack.c.b16 %v298, %v297
    %vm301 = vcmask 130048
    %v303 = vsel %vm301, %v291, 0
    %305 = vmatprep.subr.bf16.mxu0 0
    %306 = vmatpush1.bf16.msra.mxu0 0
    %307 = vmatprep.subr.bf16.mxu0 0
    %308 = vmatpush1.bf16.msra.mxu0 0
    %309 = vmatprep.subr.bf16.mxu0 0
    %310 = vmatpush1.bf16.msra.mxu0 0
    %311 = vmatprep.subr.bf16.mxu0 0
    %312 = vmatpush1.bf16.msra.mxu0 0
    %313 = vmatprep.subr.bf16.mxu0 0
    %314 = vmatpush1.bf16.msra.mxu0 0
    %315 = vmatprep.subr.bf16.mxu0 0
    %316 = vmatpush1.bf16.msra.mxu0 0
    %317 = vmatprep.subr.bf16.mxu0 0
    %318 = vmatpush1.bf16.msra.mxu0 0
    %319 = vmatprep.subr.bf16.mxu0 0
    %320 = vmatpush1.bf16.msra.mxu0 %v299
    %321 = vmatprep.subr.bf16.mxu0 0
    %322 = vmatpush2.bf16.msra.mxu0 0
    %323 = vmatprep.subr.bf16.mxu0 0
    %324 = vmatpush2.bf16.msra.mxu0 0
    %325 = vmatprep.subr.bf16.mxu0 0
    %326 = vmatpush2.bf16.msra.mxu0 0
    %327 = vmatprep.subr.bf16.mxu0 0
    %328 = vmatpush2.bf16.msra.mxu0 0
    %329 = vmatprep.subr.bf16.mxu0 0
    %330 = vmatpush2.bf16.msra.mxu0 0
    %331 = vmatprep.subr.bf16.mxu0 0
    %332 = vmatpush2.bf16.msra.mxu0 0
    %333 = vmatprep.subr.bf16.mxu0 0
    %334 = vmatpush2.bf16.msra.mxu0 0
    %335 = vmatprep.subr.bf16.mxu0 0
    %336 = vmatpush2.bf16.msra.mxu0 0
    %337 = vmatprep.mubr.bf16.mxu0 0
    %338 = vmatmul.mubr.bf16.gmra.mxu0 %v303
    %v339 = vpop.f32.mrf.mxu0
    %v340 = vadd.f32 0.0, %v339
    %v341 = vpop.f32.mrf.mxu0
    %v342 = vpop.f32.mrf.mxu0
    %v343 = vadd.f32 0.0, %v342
    %v344 = vpop.f32.mrf.mxu0
    %345 = vdwg.mxu0
    %v346 = vpack.c.bf16 %v343, %v340
    %v347 = vpack.c.bf16 %v294, %v294
    %v349 = vpack.i.b16 %v347, %v347
    %v351 = vlaneseq
    %v352 = vshrl.u32 %v351, 7
    %v353 = vsub.s32 0, %v352
    %v354 = vrot.slane %v349, %v353
    %v355 = vadd.bf16 %v346, %v354
    %v356 = vtanh.bf16.pop %v355
    %v357 = vld [vmem:[%s7] sm:$0xf]
    %v358 = vld [vmem:[%s7 + $0x4] sm:$0xf]
    %v359 = vld [vmem:[%s7 + $0x8] sm:$0xf]
    %v360 = vld [vmem:[%s7 + $0xc] sm:$0xf]
    %v361 = vld [vmem:[%s7 + $0x10] sm:$0xf]
    %v362 = vld [vmem:[%s7 + $0x14] sm:$0xf]
    %v363 = vld [vmem:[%s7 + $0x18] sm:$0xf]
    %v364 = vld [vmem:[%s7 + $0x1c] sm:$0xf]
    %v365 = vld [vmem:[%s8] sm:$0x1]
    %v367 = vlaneseq
    %v368 = vshrl.u32 %v367, 7
    %v369 = vsub.s32 0, %v368
    %v370 = vrot.slane %v365, %v369
    %v380 = vunpack.c.l.b16 %v357
    %v381 = vunpack.c.l.b16 %v358
    %v382 = vunpack.c.l.b16 %v359
    %v383 = vunpack.c.l.b16 %v360
    %v384 = vunpack.c.l.b16 %v361
    %v385 = vunpack.c.l.b16 %v362
    %v386 = vunpack.c.l.b16 %v363
    %v387 = vunpack.c.l.b16 %v364
    %v388 = vpack.c.b16 %v381, %v380
    %v389 = vpack.c.b16 %v383, %v382
    %v390 = vpack.c.b16 %v385, %v384
    %v391 = vpack.c.b16 %v387, %v386
    %v397 = vsel %vm236, %v356, 0
    %399 = vmatprep.subr.bf16.mxu0 0
    %400 = vmatpush1.bf16.msra.mxu0 0
    %401 = vmatprep.subr.bf16.mxu0 0
    %402 = vmatpush1.bf16.msra.mxu0 0
    %403 = vmatprep.subr.bf16.mxu0 0
    %404 = vmatpush1.bf16.msra.mxu0 0
    %405 = vmatprep.subr.bf16.mxu0 0
    %406 = vmatpush1.bf16.msra.mxu0 0
    %407 = vmatprep.subr.bf16.mxu0 0
    %408 = vmatpush1.bf16.msra.mxu0 %v391
    %409 = vmatprep.subr.bf16.mxu0 0
    %410 = vmatpush1.bf16.msra.mxu0 %v390
    %411 = vmatprep.subr.bf16.mxu0 0
    %412 = vmatpush1.bf16.msra.mxu0 %v389
    %413 = vmatprep.subr.bf16.mxu0 0
    %414 = vmatpush1.bf16.msra.mxu0 %v388
    %415 = vmatprep.subr.bf16.mxu0 0
    %416 = vmatpush2.bf16.msra.mxu0 0
    %417 = vmatprep.subr.bf16.mxu0 0
    %418 = vmatpush2.bf16.msra.mxu0 0
    %419 = vmatprep.subr.bf16.mxu0 0
    %420 = vmatpush2.bf16.msra.mxu0 0
    %421 = vmatprep.subr.bf16.mxu0 0
    %422 = vmatpush2.bf16.msra.mxu0 0
    %423 = vmatprep.subr.bf16.mxu0 0
    %424 = vmatpush2.bf16.msra.mxu0 0
    %425 = vmatprep.subr.bf16.mxu0 0
    %426 = vmatpush2.bf16.msra.mxu0 0
    %427 = vmatprep.subr.bf16.mxu0 0
    %428 = vmatpush2.bf16.msra.mxu0 0
    %429 = vmatprep.subr.bf16.mxu0 0
    %430 = vmatpush2.bf16.msra.mxu0 0
    %431 = vmatprep.mubr.bf16.mxu0 0
    %432 = vmatmul.mubr.bf16.gmra.mxu0 %v397
    %v433 = vpop.f32.mrf.mxu0
    %v434 = vadd.f32 %v370, %v433
    %v435 = vpop.f32.mrf.mxu0
    %v436 = vpop.f32.mrf.mxu0
    %v437 = vadd.f32 %v370, %v436
    %v438 = vpop.f32.mrf.mxu0
    %439 = vdwg.mxu0
    %v440 = vpack.c.bf16 %v437, %v434
    %v442 = vcombine.high %v440, %v440
    %v444 = vunpack.c.l.s4 1983009808
    %v445 = vunpack.c.0.s8 %v444
    %v446 = vlaneseq
    %v447 = vshrl.u32 %v446, 7
    %v448 = vsub.s32 %v445, %v447
    %v449 = vrot.slane %v440, %v448
    %v451 = vunpack.c.l.s4 1983009808
    %v452 = vunpack.c.0.s8 %v451
    %v453 = vlaneseq
    %v454 = vshrl.u32 %v453, 7
    %v455 = vsub.s32 %v452, %v454
    %v456 = vrot.slane %v442, %v455
    %v457 = vcombine.high %v449, %v449
    %v458 = vcombine.high %v456, %v456
    %463 = vst [vmem:[#allocation2] sm:$0x3] %v449
    %464 = vst [vmem:[#allocation2 + $0x2] sm:$0x3] %v457
    %465 = vst [vmem:[#allocation2 + $0x4] sm:$0x3] %v456
    %466 = vst [vmem:[#allocation2 + $0x6] sm:$0x3] %v458
    // Predicated region
    $region38: #{tpu_custom_call.1} parent=1 // pred_check
      _
    $region39: #{tpu_custom_call.1} parent=1 // pred_check_branch
      %468 = sbr.rel (0) target = $region41
    $region40: #{tpu_custom_call.1} parent=1 // pred_region
      %s470 = ssub.s32 128, 32
      %471 = vsyncadd [#allocation3], %s470
      %s472 = sshll.u32 [#allocation2], 4
      %s473 = int_to_ptr.vmem [resolvable:$true] %s472
      %478 = dma.vmem_to_hbm [thread:$0]  %s473, 32, %s9, [#allocation3], 32, 32, 2
    $region41: #{tpu_custom_call.1} parent=1 // pred_fallthru
      _
    // Predicated region
    $region42: #{tpu_custom_call.1} parent=1 // pred_check
      _
    $region43: #{tpu_custom_call.1} parent=1 // pred_check_branch
      %480 = sbr.rel (0) target = $region45
    $region44: #{tpu_custom_call.1} parent=1 // pred_region
      %481 = dma.done [#allocation3], 128
    $region45: #{tpu_custom_call.1} parent=1 // pred_fallthru
      _
    %482 = vsyncpa [#allocation3], 1

</llo_original>
